<compile_context>
chip_gen: v6e
topology: v6e:2x2x1
jax: 0.10.0
libtpu: 0.0.40
codegen_flags: <defaults>
</compile_context>

<pallas_src>
import functools
import math

import numpy as np
import jax
import jax.numpy as jnp
from jax.experimental import pallas as pl
from jax.experimental.pallas import tpu as pltpu


# ----------------------------- symbolic "activations" --------------------------
def _unary_activations(option):
    ident = lambda x: x
    pow_half = lambda x: 0.5 * x * x
    relu = lambda x: jnp.maximum(x, 0.0)
    sigmoid = jax.nn.sigmoid
    tanh = jnp.tanh
    elu = lambda x: jnp.where(x > 0, x, jnp.exp(x) - 1.0)
    silu = lambda x: x * jax.nn.sigmoid(x)
    if option == 7:
        return [ident, pow_half, relu]
    if option == 8:
        return [ident, pow_half, sigmoid]
    if option == 9:
        return [ident, pow_half, tanh]
    if option == 10:
        return [ident, pow_half, elu]
    if option == 11:
        return [ident, pow_half, silu]
    return [ident, pow_half]  # options 1..6


def _binary_activation(option):
    if option == 2:
        return lambda x: jnp.maximum(x, 0.0)
    if option == 3:
        return jax.nn.sigmoid
    if option == 4:
        return jnp.tanh
    if option == 5:
        return lambda x: jnp.where(x > 0, x, jnp.exp(x) - 1.0)
    if option == 6:
        return lambda x: x * jax.nn.sigmoid(x)
    return lambda x: x  # option 1: plain product


def _pairs(d, option):
    """(i, j) pairs in the exact order NNLayer0_lstsq builds weights2."""
    if 1 <= option <= 6:
        return [(i, j) for i in range(d) for j in range(i + 1, d)]
    return []


def _round_up(a, m):
    return ((a + m - 1) // m) * m


# ----------------------------- parameter building ------------------------------
def build_params(input_size, option, key):
    """Trainable head of NN_lstsq: nn.Linear(u+v, 1) weight + bias flattened
    into a single (u+v+1,) f32 array [w..., b]."""
    d = input_size
    n_act = len(_unary_activations(option))
    u = n_act * d
    v = len(_pairs(d, option))
    fan_in = u + v
    bound = 1.0 / math.sqrt(fan_in)
    kw, kb = jax.random.split(key)
    w = jax.random.uniform(kw, (fan_in,), jnp.float32, -bound, bound)
    b = jax.random.uniform(kb, (1,), jnp.float32, -bound, bound)
    return jnp.concatenate([w, b])  # (u + v + 1,)


def _weight_column_layout(d, option):
    """Static gather indices / mask mapping the flat head weights onto per-row
    weight columns: one column per unary activation, and one per sublane shift
    s (the pair (r-s, r) sits at row r of column n_act + s - 1; rows < s are
    zero-masked)."""
    n_act = len(_unary_activations(option))
    pairs = _pairs(d, option)
    u = n_act * d
    pair_idx = {p: u + n for n, p in enumerate(pairs)}
    n_shifts = d - 1 if pairs else 0
    n_cols = n_act + n_shifts
    idx = np.zeros((n_cols, d), np.int32)
    msk = np.zeros((n_cols, d), np.float32)
    for k in range(n_act):
        for i in range(d):
            idx[k, i] = k * d + i
            msk[k, i] = 1.0
    for s in range(1, n_shifts + 1):
        for r in range(s, d):
            idx[n_act + s - 1, r] = pair_idx[(r - s, r)]
            msk[n_act + s - 1, r] = 1.0
    return idx, msk, n_cols, n_shifts


# --------------------------------- kernel ---------------------------------------
def _make_kernel(d, option, n_act, n_shifts):
    acts = _unary_activations(option)
    bin_act = _binary_activation(option)

    def kernel(wc_ref, b_ref, x_ref, o_ref):
        # wc_ref : VMEM (n_cols, d, 1)  per-row head-weight columns
        # b_ref  : SMEM (1,)            head bias
        # x_ref  : VMEM (d, TB)         batch on the lane axis (lane-dense)
        # o_ref  : VMEM (1, TB)
        x = x_ref[...]
        tb = x.shape[1]
        wc = wc_ref[...]  # tiny, VMEM resident

        # Unary features: full (d, TB) weighted accumulation (VPU / EUP).
        acc = wc[0] * acts[0](x)
        for k in range(1, n_act):
            acc = acc + wc[k] * acts[k](x)

        # Binary features: x * shift_down(x, s) puts pair (r-s, r) at row r.
        # Rows < s multiply zero padding and carry zero weight, so they never
        # contribute (bin_act(0) is finite for every option).
        for s in range(1, n_shifts + 1):
            shifted = jnp.concatenate(
                [jnp.zeros((s, tb), jnp.float32), x[: d - s, :]], axis=0)
            acc = acc + wc[n_act + s - 1] * bin_act(x * shifted)

        # One cross-sublane reduction (XLU slot) + bias.
        o_ref[...] = jnp.sum(acc, axis=0, keepdims=True) + b_ref[0]

    return kernel


# --------------------------------- wrapper ---------------------------------------
@functools.partial(jax.jit, static_argnames=("option", "tb"))
def nn_lstsq_forward(x, w_head, option, tb=4096):
    """Pallas implementation of NN_lstsq.forward (center=0, delta=1 -> no-op norm)."""
    B, d = x.shape
    n_act = len(_unary_activations(option))
    u = n_act * d
    v = len(_pairs(d, option))
    assert w_head.shape == (u + v + 1,), w_head.shape

    idx, msk, n_cols, n_shifts = _weight_column_layout(d, option)
    w_head = w_head.astype(jnp.float32)
    w_cols = (w_head[idx] * msk).reshape(n_cols, d, 1)  # tiny VMEM weight columns
    bias = w_head[u + v:u + v + 1]                      # (1,) -> SMEM

    # Lane-dense layout: batch on lanes.  No padded copy of x -- the grid uses
    # cdiv and Pallas handles the ragged final block (masked output stores).
    x_t = x.astype(jnp.float32).T                       # (d, B)

    # Tile big enough to amortize per-step overhead, but keep >=2 grid steps
    # when B allows so both v7x TensorCores get work on the "parallel" axis.
    tb_req = _round_up(max(tb, 128), 128)
    half = _round_up(max((B + 1) // 2, 1), 128)
    tb_eff = max(128, min(tb_req, half))
    grid = (pl.cdiv(B, tb_eff),)

    kernel = _make_kernel(d, option, n_act, n_shifts)
    out = pl.pallas_call(
        kernel,
        out_shape=jax.ShapeDtypeStruct((1, B), jnp.float32),
        grid=grid,
        in_specs=[
            pl.BlockSpec((n_cols, d, 1), lambda i: (0, 0, 0)),  # weight columns
            pl.BlockSpec(memory_space=pltpu.MemorySpace.SMEM),  # bias scalar
            pl.BlockSpec((d, tb_eff), lambda i: (0, i)),        # x (d, TB)
        ],
        out_specs=pl.BlockSpec((1, tb_eff), lambda i: (0, i)),
        compiler_params=pltpu.CompilerParams(
            dimension_semantics=("parallel",)),
    )(w_cols, bias, x_t)

    return out[0, :].reshape(B, 1)


# --------------------------- pure-JAX reference (mirrors torch) ------------------
def reference_forward(x, w_head, option):
    B, d = x.shape
    acts = _unary_activations(option)
    bin_act = _binary_activation(option)
    n_act = len(acts)
    u = n_act * d
    pairs = _pairs(d, option)
    v = len(pairs)

    eye = jnp.eye(d, dtype=jnp.float32)
    rows = [jnp.tile(eye, (n_act, 1))]                    # weights1: (u, d)
    for (i, j) in pairs:                                  # weights2: (2v, d)
        rows.append(eye[i:i + 1])
        rows.append(eye[j:j + 1])
    W = jnp.concatenate(rows, axis=0)

    lin = x.astype(jnp.float32) @ W.T                     # (B, u + 2v)
    outs = [acts[k](lin[:, k * d:(k + 1) * d]) for k in range(n_act)]
    for p in range(v):
        outs.append(bin_act(lin[:, u + 2 * p:u + 2 * p + 1]
                            * lin[:, u + 2 * p + 1:u + 2 * p + 2]))
    feat = jnp.concatenate(outs, axis=1)                  # (B, u + v)
    return feat @ w_head[:u + v].reshape(-1, 1) + w_head[u + v]


# ----------------------------------- main -----------------------------------------
if __name__ == "__main__":
    input_size = 4
    batch = 16

    key = jax.random.PRNGKey(0)
    kx, k1, k3, k9 = jax.random.split(key, 4)
    x = jax.random.normal(kx, (batch, input_size), dtype=jnp.float32)

    # option 1: identity + 0.5*x^2 unaries, plain pairwise products
    # option 3: same unaries, sigmoid(x_i * x_j) binary features
    # option 9: identity + 0.5*x^2 + tanh unaries, no binary features
    for option, kp in ((1, k1), (3, k3), (9, k9)):
        w_head = build_params(input_size, option, kp)
        out = jax.block_until_ready(nn_lstsq_forward(x, w_head, option))
        ref = reference_forward(x, w_head, option)
        assert out.shape == (batch, 1), out.shape
        assert jnp.allclose(out, ref, atol=2e-5, rtol=2e-5), (option, out, ref)

    print("KERNEL_OK")
</pallas_src>

<mosaic_0001>
module attributes {stable_mosaic.version = 11 : i64} {
  func.func @kernel(%arg0: i32, %arg1: memref<5x4x1xf32, #tpu.memory_space<vmem>>, %arg2: memref<1xf32, #tpu.memory_space<smem>>, %arg3: memref<4x128xf32, #tpu.memory_space<vmem>>, %arg4: memref<1x128xf32, #tpu.memory_space<vmem>>) attributes {dimension_semantics = [#tpu.dimension_semantics<parallel>], iteration_bounds = array<i64: 1>, scalar_prefetch = 0 : i64, scratch_operands = 0 : i64, tpu.core_type = #tpu.core_type<tc>, window_params = [{pipeline_mode = #tpu.pipeline_mode<synchronous>, transform_indices = @transform_0, window_bounds = array<i64: 5, 4, 1>}, {transform_indices = @transform_1, window_bounds = array<i64: 1>}, {transform_indices = @transform_2, window_bounds = array<i64: 4, 128>}, {transform_indices = @transform_3, window_bounds = array<i64: 1, 128>}]} {
    %c0 = arith.constant 0 : index
    %c0_0 = arith.constant 0 : index
    %0 = vector.load %arg3[%c0, %c0_0] : memref<4x128xf32, #tpu.memory_space<vmem>>, vector<4x128xf32>
    %c0_1 = arith.constant 0 : index
    %c0_2 = arith.constant 0 : index
    %c0_3 = arith.constant 0 : index
    %1 = vector.load %arg1[%c0_1, %c0_2, %c0_3] : memref<5x4x1xf32, #tpu.memory_space<vmem>>, vector<5x4x1xf32>
    %2 = vector.extract_strided_slice %1 {offsets = [0, 0, 0], sizes = [1, 4, 1], strides = [1, 1, 1]} : vector<5x4x1xf32> to vector<1x4x1xf32>
    %3 = vector.shape_cast %2 : vector<1x4x1xf32> to vector<4x1xf32>
    %4 = vector.broadcast %3 : vector<4x1xf32> to vector<4x128xf32>
    %5 = arith.mulf %4, %0 : vector<4x128xf32>
    %6 = vector.extract_strided_slice %1 {offsets = [1, 0, 0], sizes = [1, 4, 1], strides = [1, 1, 1]} : vector<5x4x1xf32> to vector<1x4x1xf32>
    %7 = vector.shape_cast %6 : vector<1x4x1xf32> to vector<4x1xf32>
    %cst = arith.constant 5.000000e-01 : f32
    %8 = vector.broadcast %cst : f32 to vector<4x128xf32>
    %9 = arith.mulf %8, %0 : vector<4x128xf32>
    %10 = arith.mulf %9, %0 : vector<4x128xf32>
    %11 = vector.broadcast %7 : vector<4x1xf32> to vector<4x128xf32>
    %12 = arith.mulf %11, %10 : vector<4x128xf32>
    %13 = arith.addf %5, %12 : vector<4x128xf32>
    %cst_4 = arith.constant 0.000000e+00 : f32
    %14 = vector.broadcast %cst_4 : f32 to vector<1x128xf32>
    %15 = vector.extract_strided_slice %0 {offsets = [0, 0], sizes = [3, 128], strides = [1, 1]} : vector<4x128xf32> to vector<3x128xf32>
    %16 = tpu.concatenate %14, %15 in 0 : vector<1x128xf32>, vector<3x128xf32> -> vector<4x128xf32>
    %17 = vector.extract_strided_slice %1 {offsets = [2, 0, 0], sizes = [1, 4, 1], strides = [1, 1, 1]} : vector<5x4x1xf32> to vector<1x4x1xf32>
    %18 = vector.shape_cast %17 : vector<1x4x1xf32> to vector<4x1xf32>
    %19 = arith.mulf %0, %16 : vector<4x128xf32>
    %20 = vector.broadcast %18 : vector<4x1xf32> to vector<4x128xf32>
    %21 = arith.mulf %20, %19 : vector<4x128xf32>
    %22 = arith.addf %13, %21 : vector<4x128xf32>
    %cst_5 = arith.constant 0.000000e+00 : f32
    %23 = vector.broadcast %cst_5 : f32 to vector<2x128xf32>
    %24 = vector.extract_strided_slice %0 {offsets = [0, 0], sizes = [2, 128], strides = [1, 1]} : vector<4x128xf32> to vector<2x128xf32>
    %25 = tpu.concatenate %23, %24 in 0 : vector<2x128xf32>, vector<2x128xf32> -> vector<4x128xf32>
    %26 = vector.extract_strided_slice %1 {offsets = [3, 0, 0], sizes = [1, 4, 1], strides = [1, 1, 1]} : vector<5x4x1xf32> to vector<1x4x1xf32>
    %27 = vector.shape_cast %26 : vector<1x4x1xf32> to vector<4x1xf32>
    %28 = arith.mulf %0, %25 : vector<4x128xf32>
    %29 = vector.broadcast %27 : vector<4x1xf32> to vector<4x128xf32>
    %30 = arith.mulf %29, %28 : vector<4x128xf32>
    %31 = arith.addf %22, %30 : vector<4x128xf32>
    %cst_6 = arith.constant 0.000000e+00 : f32
    %32 = vector.broadcast %cst_6 : f32 to vector<3x128xf32>
    %33 = vector.extract_strided_slice %0 {offsets = [0, 0], sizes = [1, 128], strides = [1, 1]} : vector<4x128xf32> to vector<1x128xf32>
    %34 = tpu.concatenate %32, %33 in 0 : vector<3x128xf32>, vector<1x128xf32> -> vector<4x128xf32>
    %35 = vector.extract_strided_slice %1 {offsets = [4, 0, 0], sizes = [1, 4, 1], strides = [1, 1, 1]} : vector<5x4x1xf32> to vector<1x4x1xf32>
    %36 = vector.shape_cast %35 : vector<1x4x1xf32> to vector<4x1xf32>
    %37 = arith.mulf %0, %34 : vector<4x128xf32>
    %38 = vector.broadcast %36 : vector<4x1xf32> to vector<4x128xf32>
    %39 = arith.mulf %38, %37 : vector<4x128xf32>
    %40 = arith.addf %31, %39 : vector<4x128xf32>
    %cst_7 = arith.constant dense<0.000000e+00> : vector<128xf32>
    %41 = vector.multi_reduction <add>, %40, %cst_7 [0] : vector<4x128xf32> to vector<128xf32>
    %42 = vector.shape_cast %41 : vector<128xf32> to vector<1x128xf32>
    %c0_8 = arith.constant 0 : index
    %43 = memref.load %arg2[%c0_8] : memref<1xf32, #tpu.memory_space<smem>>
    %44 = vector.broadcast %43 : f32 to vector<1x128xf32>
    %45 = arith.addf %42, %44 : vector<1x128xf32>
    %c0_9 = arith.constant 0 : index
    %c0_10 = arith.constant 0 : index
    %46 = vector.load %arg4[%c0_9, %c0_10] : memref<1x128xf32, #tpu.memory_space<vmem>>, vector<1x128xf32>
    tpu.vector_store %arg4[%c0_9, %c0_10], %45 {strides = array<i32>} : memref<1x128xf32, #tpu.memory_space<vmem>>, vector<1x128xf32>,
    return
  }
  func.func @transform_0(%arg0: i32) -> (i32, i32, i32) {
    %c0_i32 = arith.constant 0 : i32
    %c0_i32_0 = arith.constant 0 : i32
    %c0_i32_1 = arith.constant 0 : i32
    %c0_i32_2 = arith.constant 0 : i32
    return %c0_i32, %c0_i32_0, %c0_i32_1 : i32, i32, i32
  }
  func.func @transform_1(%arg0: i32) -> i32 {
    %c0_i32 = arith.constant 0 : i32
    %c0_i32_0 = arith.constant 0 : i32
    return %c0_i32 : i32
  }
  func.func @transform_2(%arg0: i32) -> (i32, i32) {
    %c0_i32 = arith.constant 0 : i32
    %c0_i32_0 = arith.constant 0 : i32
    return %c0_i32, %arg0 : i32, i32
  }
  func.func @transform_3(%arg0: i32) -> (i32, i32) {
    %c0_i32 = arith.constant 0 : i32
    %c0_i32_0 = arith.constant 0 : i32
    return %c0_i32, %arg0 : i32, i32
  }
}

</mosaic_0001>

<llo_original>
// kernel: mul.9
$region0: #{mul.9}
  #allocation0 [shape = 's32[1]{0}', space=sflag, size = 0x4, scoped, tag = 'scoped memory for mul.9']
  %s0 = inlined_call_operand.vmem [shape: f32[20], index: 0, kind: input, shape index: {}]
  %s1 = inlined_call_operand.vmem [shape: f32[20], index: 1, kind: input, shape index: {}]
  %s2 = inlined_call_operand.vmem [shape: f32[20], index: 2, kind: output, shape index: {}]
  %v3 = vld [vmem:[%s0] sm:$0x1]
  %v4 = vld [vmem:[%s1] sm:$0x1]
  %5 = xla_tuple %v3, %v4
  %6 = xla_tuple %5
  %v7 = vmul.f32 %v3, %v4
  %8 = xla_tuple %v7
  %9 = vst [vmem:[%s2] sm:$0x1] %v7

// kernel: nn_lstsq_forward.1
$region0: #{nn_lstsq_forward.1}
  #allocation0 [shape = 'u32[]', space=smem, size = 0x4, offset = 0x4, fixed_abs, tag = 'smem constant byte address 0x4 - core index']
  #allocation1 [shape = 'u32[144,128]{1,0:T(1,128)}', space=vmem, size = 0x12000, scoped, tag = 'internal scratch']
  #allocation2 [shape = 'f32[1]{0:T(128)S(6)}', space=smem, size = 0x200, scoped, tag = 'scoped memory for nn_lstsq_forward.1']
  %s0 = inlined_call_operand.vmem [shape: f32[5,4,1], index: 0, kind: input, shape index: {}]
  %s1 = inlined_call_operand.<no memory space> [shape: f32[1], index: 1, kind: input, shape index: {}]
  %s2 = inlined_call_operand.vmem [shape: f32[4,16], index: 2, kind: input, shape index: {}]
  %s3 = inlined_call_operand.hbm [shape: f32[1,16], index: 3, kind: output, shape index: {}]
  %s4 = sld [smem:[#allocation0]]
  $region22: #{nn_lstsq_forward.1} parent=0
    _
  %s6 = ssub.s32 1, %s4
  %s7 = scalar_select 0, %s6, %s4
  %8 = sst [smem:[#allocation2]] %s1
  $region1: #{nn_lstsq_forward.1} parent=0
    #allocation3 [shape = 'u8[512]{0}', space=vmem, size = 0x400, scoped, tag = 'output window, operand 0, single buffered']
    #allocation4 [shape = 's32[1]{0}', space=sflag, size = 0x4, scoped, tag = 'scoped memory for nn_lstsq_forward.1']
    %9 = vsyncpa [#allocation4], 0
    // Predicated region
    $region2: #{nn_lstsq_forward.1} parent=1 // pred_check
      _
    $region3: #{nn_lstsq_forward.1} parent=1 // pred_check_branch
      %11 = sbr.rel (0) target = $region5
    $region4: #{nn_lstsq_forward.1} parent=1 // pred_region
      _
    $region5: #{nn_lstsq_forward.1} parent=1 // pred_fallthru
      _
    // Predicated region
    $region6: #{nn_lstsq_forward.1} parent=1 // pred_check
      _
    $region7: #{nn_lstsq_forward.1} parent=1 // pred_check_branch
      %13 = sbr.rel (0) target = $region9
    $region8: #{nn_lstsq_forward.1} parent=1 // pred_region
      _
    $region9: #{nn_lstsq_forward.1} parent=1 // pred_fallthru
      _
    // Predicated region
    $region10: #{nn_lstsq_forward.1} parent=1 // pred_check
      _
    $region11: #{nn_lstsq_forward.1} parent=1 // pred_check_branch
      %15 = sbr.rel (0) target = $region13
    $region12: #{nn_lstsq_forward.1} parent=1 // pred_region
      _
    $region13: #{nn_lstsq_forward.1} parent=1 // pred_fallthru
      _
    %v16 = vld [vmem:[%s2] sm:$0xf]
    %v17 = vld [vmem:[%s0] sm:$0xf]
    %v18 = vld [vmem:[%s0 + $0x4] sm:$0xf]
    %v19 = vld [vmem:[%s0 + $0x8] sm:$0xf]
    %v20 = vld [vmem:[%s0 + $0xc] sm:$0xf]
    %v21 = vld [vmem:[%s0 + $0x10] sm:$0xf]
    %23 = vset.pattern.permute.xlu0 0
    %24 = vperm.xlu0 %23, %v17
    %v25 = vpop.permute.xlu0 %24
    %v27 = vmul.f32 %v25, %v16
    %v28 = vmul.f32 %v16, 0.5
    %v29 = vmul.f32 %v28, %v16
    %31 = vset.pattern.permute.xlu0 0
    %32 = vperm.xlu0 %31, %v18
    %v33 = vpop.permute.xlu0 %32
    %v35 = vmul.f32 %v33, %v29
    %v36 = vadd.f32 %v27, %v35
    %v38 = vrot.slane %v16, 7
    %vm40 = vcmask 1040384
    %v41 = vsel %vm40, 0.0, %v38
    %v42 = vmul.f32 %v16, %v41
    %44 = vset.pattern.permute.xlu0 0
    %45 = vperm.xlu0 %44, %v19
    %v46 = vpop.permute.xlu0 %45
    %v48 = vmul.f32 %v46, %v42
    %v49 = vadd.f32 %v36, %v48
    %v50 = vrot.slane %v16, 6
    %vm52 = vcmask 1041408
    %v53 = vsel %vm52, 0.0, %v50
    %v54 = vmul.f32 %v16, %v53
    %56 = vset.pattern.permute.xlu0 0
    %57 = vperm.xlu0 %56, %v20
    %v58 = vpop.permute.xlu0 %57
    %v60 = vmul.f32 %v58, %v54
    %v61 = vadd.f32 %v49, %v60
    %v62 = vrot.slane %v16, 5
    %vm64 = vcmask 1042432
    %v65 = vsel %vm64, 0.0, %v62
    %v66 = vmul.f32 %v16, %v65
    %68 = vset.pattern.permute.xlu0 0
    %69 = vperm.xlu0 %68, %v21
    %v70 = vpop.permute.xlu0 %69
    %v72 = vmul.f32 %v70, %v66
    %v73 = vadd.f32 %v61, %v72
    %vm74 = vcmask 1043456
    %v75 = vsel %vm74, %v73, 0.0
    %v76 = vrot.slane %v75, 4
    %v77 = vadd.f32 %v75, %v76
    %v78 = vrot.slane %v77, 2
    %v79 = vadd.f32 %v77, %v78
    %v80 = vrot.slane %v79, 1
    %v81 = vadd.f32 %v79, %v80
    %s82 = sld [smem:[#allocation2]]
    %v83 = vstv %s82
    %v84 = vadd.f32 %v81, %v83
    %85 = vst [vmem:[#allocation3] sm:$0x1] %v84
    // Predicated region
    $region14: #{nn_lstsq_forward.1} parent=1 // pred_check
      _
    $region15: #{nn_lstsq_forward.1} parent=1 // pred_check_branch
      %87 = sbr.rel (0) target = $region17
    $region16: #{nn_lstsq_forward.1} parent=1 // pred_region
      %s89 = ssub.s32 16, 16
      %90 = vsyncadd [#allocation4], %s89
      %s92 = sshll.u32 [#allocation3], 4
      %s93 = int_to_ptr.vmem [resolvable:$true] %s92
      %95 = dma.vmem_to_hbm [thread:$0]  %s93, 16, %s3, [#allocation4]
    $region17: #{nn_lstsq_forward.1} parent=1 // pred_fallthru
      _
    // Predicated region
    $region18: #{nn_lstsq_forward.1} parent=1 // pred_check
      _
    $region19: #{nn_lstsq_forward.1} parent=1 // pred_check_branch
      %97 = sbr.rel (0) target = $region21
    $region20: #{nn_lstsq_forward.1} parent=1 // pred_region
      %98 = dma.done [#allocation4], 16
    $region21: #{nn_lstsq_forward.1} parent=1 // pred_fallthru
      _
    %99 = vsyncpa [#allocation4], 1

</llo_original>
